<compile_context>
chip_gen: v6e
topology: v6e:2x2x1
jax: 0.10.0
libtpu: 0.0.40
codegen_flags: <defaults>
</compile_context>

<pallas_src>
import jax
import jax.numpy as jnp
from jax.experimental import pallas as pl
from jax.experimental.pallas import tpu as pltpu


def _round_up(x, m):
    return ((x + m - 1) // m) * m


def _dot(a, b):
    # Highest-precision f32 matmuls for the weight folding and the reference,
    # so folded vs. unfolded math agrees to ~f32 rounding.
    return jnp.dot(a, b, precision=jax.lax.Precision.HIGHEST)


# ----------------------------------------------------------------------------
# Kernel
# ----------------------------------------------------------------------------
def neumf_kernel(emb_ref, bias_ref, out_ref):
    """One batch tile of the fully-folded NeuMF forward.

    emb_ref  : [4E, Btile] bf16 — rows 0:E   = user_GMF emb (pre-scaled by w_g)
                                   rows E:2E  = item_GMF emb
                                   rows 2E:3E = user_MLP emb (pre-scaled by w_u)
                                   rows 3E:4E = item_MLP emb (pre-scaled by w_i)
               (batch on the lane axis → lane-dense loads)
    bias_ref : [1, 1]  f32      — folded total bias (VMEM-resident)
    out_ref  : [1, Btile] f32   — sigmoid scores, batch on lanes (lane-dense store)
    """
    E = emb_ref.shape[0] // 4

    # Upcast to f32 immediately after the load (v5e VPU has no bf16 ops; the
    # cast is free relative to the DMA on all generations).
    emb = emb_ref[...].astype(jnp.float32)        # [4E, Btile]
    ug = emb[0 * E:1 * E, :]
    ig = emb[1 * E:2 * E, :]
    um = emb[2 * E:3 * E, :]
    im = emb[3 * E:4 * E, :]

    # Pure VPU work, one sublane reduce (XLU), EUP sigmoid.
    t = ug * ig + um + im                                        # [E, Btile]
    logit = jnp.sum(t, axis=0, keepdims=True) + bias_ref[...]    # [1, Btile]
    out_ref[...] = jax.nn.sigmoid(logit).astype(out_ref.dtype)


# ----------------------------------------------------------------------------
# One-time weight prep: fold the activation-free MLP + output Linear and bake
# the folded coefficients into pre-transposed embedding tables.
# ----------------------------------------------------------------------------
def precompose(params):
    """Collapse MLP (4 Linears, no activations) and the output Linear.

    Returns per-dim coefficient columns (w_g, w_u, w_i), each [E, 1], and the
    folded scalar bias [1, 1], such that
        logit = (ug*ig) @ w_g + um @ w_u + im @ w_i + bias
    equals the original pre-sigmoid forward (up to f32 rounding).
    """
    E = params["user_gmf_emb"].shape[1]

    # MLP chain: x @ W + b with W = w1 w2 w3 w4, b = ((b1 w2 + b2) w3 + b3) w4 + b4
    W = _dot(_dot(_dot(params["w1"], params["w2"]), params["w3"]), params["w4"])      # [2E, E]
    b = _dot(_dot(_dot(params["b1"], params["w2"]) + params["b2"], params["w3"])
             + params["b3"], params["w4"]) + params["b4"]                              # [1, E]

    wo = params["wo"]                      # [2E, 1]
    wo_g, wo_m = wo[:E, :], wo[E:, :]      # [E, 1] each

    w_mlp_fold = _dot(W, wo_m)             # [2E, 1]
    w_u, w_i = w_mlp_fold[:E, :], w_mlp_fold[E:, :]

    bias = (_dot(b, wo_m) + params["bo"]).astype(jnp.float32)              # [1, 1]
    return wo_g.astype(jnp.float32), w_u.astype(jnp.float32), w_i.astype(jnp.float32), bias


def prepare_tables(params, emb_dtype=jnp.bfloat16):
    """Pre-transposed ([E, num]) coefficient-scaled embedding tables + bias.

    This is one-time weight prep — call it once at load time, NOT per batch.
    """
    w_g, w_u, w_i, bias = precompose(params)
    ugt = (params["user_gmf_emb"] * w_g.T).T.astype(emb_dtype)   # [E, U+1]
    igt = params["item_gmf_emb"].T.astype(emb_dtype)             # [E, I+1]
    umt = (params["user_mlp_emb"] * w_u.T).T.astype(emb_dtype)   # [E, U+1]
    imt = (params["item_mlp_emb"] * w_i.T).T.astype(emb_dtype)   # [E, I+1]
    return (ugt, igt, umt, imt), bias


# ----------------------------------------------------------------------------
# Wrapper
# ----------------------------------------------------------------------------
def neumf_forward(user, item, tables, bias, *, btile=2048):
    """user, item: int32 [B]. Returns sigmoid scores [B, 1] (f32)."""
    ugt, igt, umt, imt = tables
    E = ugt.shape[0]
    B = user.shape[0]
    emb_dtype = ugt.dtype

    # Lane-dense gather glue (XLA): tables are already [E, num], so the
    # [4E, B] operand is produced directly — no [B, 4E] + transpose.
    ug = jnp.take(ugt, user, axis=1)   # [E, B]
    ig = jnp.take(igt, item, axis=1)
    um = jnp.take(umt, user, axis=1)
    im = jnp.take(imt, item, axis=1)
    emb_t = jnp.concatenate([ug, ig, um, im], axis=0).astype(emb_dtype)    # [4E, B]

    # Batch tile: multiple of 128 (lane-dense blocks), capped by padded B.
    # Prefer large tiles (review: >=1024 hits ~86%+ of HBM roofline); on v7x
    # with ('parallel',) semantics an even number of grid steps keeps both
    # TensorCores busy for large B.
    bt = min(btile, _round_up(B, 128))
    bt = _round_up(bt, 128)
    Bp = _round_up(B, bt)
    if Bp != B:
        emb_t = jnp.pad(emb_t, ((0, 0), (0, Bp - B)))

    grid = (Bp // bt,)
    nE = 4 * E
    ebytes = jnp.dtype(emb_dtype).itemsize

    cost = pl.CostEstimate(
        flops=4 * E * Bp,
        transcendentals=Bp,
        bytes_accessed=nE * Bp * ebytes + Bp * 4 + 4,
    )

    out_t = pl.pallas_call(
        neumf_kernel,
        out_shape=jax.ShapeDtypeStruct((1, Bp), jnp.float32),
        grid_spec=pltpu.PrefetchScalarGridSpec(
            num_scalar_prefetch=0,
            grid=grid,
            in_specs=[
                pl.BlockSpec((nE, bt), lambda i: (0, i)),   # embeddings: tiled over batch
                pl.BlockSpec((1, 1), lambda i: (0, 0)),     # folded bias: VMEM-resident
            ],
            out_specs=pl.BlockSpec((1, bt), lambda i: (0, i)),  # lane-dense output row
        ),
        compiler_params=pltpu.CompilerParams(
            dimension_semantics=("parallel",),        # shards batch grid across TCs on v7x
            vmem_limit_bytes=32 * 1024 * 1024,        # explicit, v7x-safe budget
        ),
        cost_estimate=cost,
    )(emb_t, bias)

    return out_t[0, :B].reshape(B, 1)


# ----------------------------------------------------------------------------
# Params (weights stored as [in, out]; biases as [1, out]) and pure-JAX reference
# ----------------------------------------------------------------------------
def make_params(key, user_num, item_num, emb_dim=8,
                layer_one=64, layer_two=32, layer_three=16, layer_out=8):
    assert layer_out == emb_dim, "NeuMF requires layer_out == emb_dim"
    input_dim = emb_dim * 2
    keys = jax.random.split(key, 14)

    def init(k, shape, scale=0.1):
        return (scale * jax.random.normal(k, shape)).astype(jnp.float32)

    return {
        "user_gmf_emb": init(keys[0], (user_num + 1, emb_dim)),
        "item_gmf_emb": init(keys[1], (item_num + 1, emb_dim)),
        "user_mlp_emb": init(keys[2], (user_num + 1, emb_dim)),
        "item_mlp_emb": init(keys[3], (item_num + 1, emb_dim)),
        "w1": init(keys[4], (input_dim, layer_one)),
        "b1": init(keys[5], (1, layer_one)),
        "w2": init(keys[6], (layer_one, layer_two)),
        "b2": init(keys[7], (1, layer_two)),
        "w3": init(keys[8], (layer_two, layer_three)),
        "b3": init(keys[9], (1, layer_three)),
        "w4": init(keys[10], (layer_three, layer_out)),
        "b4": init(keys[11], (1, layer_out)),
        "wo": init(keys[12], (input_dim, 1)),
        "bo": init(keys[13], (1, 1)),
    }


def neumf_reference(user, item, params):
    """Pure-JAX f32 reference mirroring the PyTorch forward (un-folded)."""
    ug = jnp.take(params["user_gmf_emb"], user, axis=0)
    ig = jnp.take(params["item_gmf_emb"], item, axis=0)
    um = jnp.take(params["user_mlp_emb"], user, axis=0)
    im = jnp.take(params["item_mlp_emb"], item, axis=0)
    g_out = ug * ig
    x = jnp.concatenate([um, im], axis=1)
    h = _dot(x, params["w1"]) + params["b1"]
    h = _dot(h, params["w2"]) + params["b2"]
    h = _dot(h, params["w3"]) + params["b3"]
    m_out = _dot(h, params["w4"]) + params["b4"]
    cat = jnp.concatenate([g_out, m_out], axis=1)
    return jax.nn.sigmoid(_dot(cat, params["wo"]) + params["bo"])


if __name__ == "__main__":
    key = jax.random.PRNGKey(0)
    user_num, item_num = 50, 100
    batch = 8

    k_params, k_user, k_item = jax.random.split(key, 3)
    params = make_params(k_params, user_num, item_num)

    user = jax.random.randint(k_user, (batch,), 0, user_num + 1, dtype=jnp.int32)
    item = jax.random.randint(k_item, (batch,), 0, item_num + 1, dtype=jnp.int32)

    # One-time weight prep (folding + bf16 table packing), outside the hot path.
    tables, bias = prepare_tables(params, emb_dtype=jnp.bfloat16)

    fwd = jax.jit(lambda u, i: neumf_forward(u, i, tables, bias))
    out = jax.block_until_ready(fwd(user, item))

    ref = neumf_reference(user, item, params)
    assert out.shape == (batch, 1), out.shape
    # Tolerance accounts for bf16 quantization of the embedding stream
    # (accumulation and the folded weights stay f32).
    assert jnp.allclose(out, ref, atol=2e-3, rtol=2e-3), (out, ref)

    print("KERNEL_OK")
</pallas_src>

<mosaic_0001>
module attributes {stable_mosaic.version = 11 : i64} {
  func.func @neumf_kernel(%arg0: i32, %arg1: memref<32x128xbf16, #tpu.memory_space<vmem>>, %arg2: memref<1x1xf32, #tpu.memory_space<vmem>>, %arg3: memref<1x128xf32, #tpu.memory_space<vmem>>) attributes {dimension_semantics = [#tpu.dimension_semantics<parallel>], iteration_bounds = array<i64: 1>, scalar_prefetch = 0 : i64, scratch_operands = 0 : i64, tpu.core_type = #tpu.core_type<tc>, window_params = [{transform_indices = @transform_0, window_bounds = array<i64: 32, 128>}, {pipeline_mode = #tpu.pipeline_mode<synchronous>, transform_indices = @transform_1, window_bounds = array<i64: 1, 1>}, {transform_indices = @transform_2, window_bounds = array<i64: 1, 128>}]} {
    %c0 = arith.constant 0 : index
    %c0_0 = arith.constant 0 : index
    %0 = vector.load %arg1[%c0, %c0_0] : memref<32x128xbf16, #tpu.memory_space<vmem>>, vector<32x128xbf16>
    %1 = arith.extf %0 : vector<32x128xbf16> to vector<32x128xf32>
    %2 = vector.extract_strided_slice %1 {offsets = [0, 0], sizes = [8, 128], strides = [1, 1]} : vector<32x128xf32> to vector<8x128xf32>
    %3 = vector.extract_strided_slice %1 {offsets = [8, 0], sizes = [8, 128], strides = [1, 1]} : vector<32x128xf32> to vector<8x128xf32>
    %4 = vector.extract_strided_slice %1 {offsets = [16, 0], sizes = [8, 128], strides = [1, 1]} : vector<32x128xf32> to vector<8x128xf32>
    %5 = vector.extract_strided_slice %1 {offsets = [24, 0], sizes = [8, 128], strides = [1, 1]} : vector<32x128xf32> to vector<8x128xf32>
    %6 = arith.mulf %2, %3 : vector<8x128xf32>
    %7 = arith.addf %6, %4 : vector<8x128xf32>
    %8 = arith.addf %7, %5 : vector<8x128xf32>
    %cst = arith.constant dense<0.000000e+00> : vector<128xf32>
    %9 = vector.multi_reduction <add>, %8, %cst [0] : vector<8x128xf32> to vector<128xf32>
    %10 = vector.shape_cast %9 : vector<128xf32> to vector<1x128xf32>
    %c0_1 = arith.constant 0 : index
    %c0_2 = arith.constant 0 : index
    %11 = vector.load %arg2[%c0_1, %c0_2] : memref<1x1xf32, #tpu.memory_space<vmem>>, vector<1x1xf32>
    %12 = vector.broadcast %11 : vector<1x1xf32> to vector<1x128xf32>
    %13 = arith.addf %10, %12 : vector<1x128xf32>
    %14 = arith.negf %13 : vector<1x128xf32>
    %15 = math.exp %14 : vector<1x128xf32>
    %cst_3 = arith.constant 1.000000e+00 : f32
    %16 = vector.broadcast %cst_3 : f32 to vector<1x128xf32>
    %17 = arith.addf %16, %15 : vector<1x128xf32>
    %18 = arith.divf %16, %17 : vector<1x128xf32>
    %c0_4 = arith.constant 0 : index
    %c0_5 = arith.constant 0 : index
    %19 = vector.load %arg3[%c0_4, %c0_5] : memref<1x128xf32, #tpu.memory_space<vmem>>, vector<1x128xf32>
    tpu.vector_store %arg3[%c0_4, %c0_5], %18 {strides = array<i32>} : memref<1x128xf32, #tpu.memory_space<vmem>>, vector<1x128xf32>,
    return
  }
  func.func @transform_0(%arg0: i32) -> (i32, i32) {
    %c0_i32 = arith.constant 0 : i32
    %c0_i32_0 = arith.constant 0 : i32
    return %c0_i32, %arg0 : i32, i32
  }
  func.func @transform_1(%arg0: i32) -> (i32, i32) {
    %c0_i32 = arith.constant 0 : i32
    %c0_i32_0 = arith.constant 0 : i32
    %c0_i32_1 = arith.constant 0 : i32
    return %c0_i32, %c0_i32_0 : i32, i32
  }
  func.func @transform_2(%arg0: i32) -> (i32, i32) {
    %c0_i32 = arith.constant 0 : i32
    %c0_i32_0 = arith.constant 0 : i32
    return %c0_i32, %arg0 : i32, i32
  }
}

</mosaic_0001>

<llo_original>
// kernel: _lambda_.1
$region0: #{_lambda_.1}
  #allocation0 [shape = 'u32[]', space=smem, size = 0x4, offset = 0x4, fixed_abs, tag = 'smem constant byte address 0x4 - core index']
  #allocation1 [shape = 'u32[144,128]{1,0:T(1,128)}', space=vmem, size = 0x12000, scoped, tag = 'internal scratch']
  #allocation2 [shape = 'f32[1,1]{1,0:T(1,128)S(1)}', space=vmem, size = 0x200, scoped, tag = 'scoped memory for _lambda_.1']
  %s0 = inlined_call_operand.vmem [shape: bf16[32,128], index: 0, kind: input, shape index: {}]
  %s1 = inlined_call_operand.<no memory space> [shape: f32[1,1], index: 1, kind: input, shape index: {}]
  %s2 = inlined_call_operand.vmem [shape: f32[1,128], index: 2, kind: output, shape index: {}]
  %s3 = sld [smem:[#allocation0]]
  $region18: #{_lambda_.1} parent=0
    _
  %s5 = ssub.s32 1, %s3
  %s6 = scalar_select 0, %s5, %s3
  %v7 = vstv %s1
  %8 = vst [vmem:[#allocation2] sm:$0x1] %v7
  // Predicated region
  $region2: #{_lambda_.1} parent=0 // pred_check
    _
  $region3: #{_lambda_.1} parent=0 // pred_check_branch
    %10 = sbr.rel (0) target = $region5
  $region4: #{_lambda_.1} parent=0 // pred_region
    _
  $region5: #{_lambda_.1} parent=0 // pred_fallthru
    _
  // Predicated region
  $region6: #{_lambda_.1} parent=0 // pred_check
    _
  $region7: #{_lambda_.1} parent=0 // pred_check_branch
    %12 = sbr.rel (0) target = $region9
  $region8: #{_lambda_.1} parent=0 // pred_region
    _
  $region9: #{_lambda_.1} parent=0 // pred_fallthru
    _
  %v13 = vld [vmem:[%s0] sm:$0xf]
  %v14 = vld [vmem:[%s0 + $0x4] sm:$0xf]
  %v15 = vld [vmem:[%s0 + $0x8] sm:$0xf]
  %v16 = vld [vmem:[%s0 + $0xc] sm:$0xf]
  %v17 = vunpack.c.l.bf16 %v13
  %v18 = vunpack.c.l.bf16 %v14
  %v19 = vunpack.c.l.bf16 %v15
  %v20 = vunpack.c.l.bf16 %v16
  %v21 = vmul.f32 %v17, %v18
  %v22 = vadd.f32 %v21, %v19
  %v23 = vadd.f32 %v22, %v20
  %v24 = vrot.slane %v23, 4
  %v25 = vadd.f32 %v23, %v24
  %v26 = vrot.slane %v25, 2
  %v27 = vadd.f32 %v25, %v26
  %v28 = vrot.slane %v27, 1
  %v29 = vadd.f32 %v27, %v28
  %v30 = vld [vmem:[#allocation2] sm:$0x1]
  %32 = vset.pattern.permute.xlu0 0
  %33 = vperm.xlu0 %32, %v30
  %v34 = vpop.permute.xlu0 %33
  %v36 = vlaneseq
  %v37 = vshrl.u32 %v36, 7
  %v38 = vsub.s32 0, %v37
  %v39 = vrot.slane %v34, %v38
  %v40 = vadd.f32 %v29, %v39
  %v41 = vxor.u32 %v40, 2147483648
  %v42 = vmul.f32 %v41, 1.442695
  %v43 = vpow.pop %v42
  %v44 = vadd.f32 %v43, 1.0
  %v45 = vrcp.pop %v44
  %v46 = vmul.f32 1.0, %v45
  %47 = vst [vmem:[%s2] sm:$0x1] %v46
  // Predicated region
  $region10: #{_lambda_.1} parent=0 // pred_check
    _
  $region11: #{_lambda_.1} parent=0 // pred_check_branch
    %49 = sbr.rel (0) target = $region13
  $region12: #{_lambda_.1} parent=0 // pred_region
    _
  $region13: #{_lambda_.1} parent=0 // pred_fallthru
    _
  // Predicated region
  $region14: #{_lambda_.1} parent=0 // pred_check
    _
  $region15: #{_lambda_.1} parent=0 // pred_check_branch
    %51 = sbr.rel (0) target = $region17
  $region16: #{_lambda_.1} parent=0 // pred_region
    _
  $region17: #{_lambda_.1} parent=0 // pred_fallthru
    _

</llo_original>
